<compile_context>
chip_gen: v7x
topology: tpu7x:2x2x1
jax: 0.10.0
libtpu: 0.0.40
codegen_flags: <defaults>
</compile_context>

<pallas_src>
import functools

import jax
import jax.numpy as jnp
from jax.experimental import pallas as pl
from jax.experimental.pallas import tpu as pltpu

_NEG_LARGE = -1e30   # suppresses padded class columns in max / exp-sum / argmax (kept in f32)
_LANE = 128
_SUBLANE = 8


def _round_up(x, m):
    return ((x + m - 1) // m) * m


def _plan_tiles(n, f, c_pad, dt_bytes, emit_log_probs):
    """Row-tile size + VMEM limit, generation aware and accounting for the resident W."""
    try:
        cap = int(pltpu.get_tpu_info().vmem_capacity_bytes)   # 128 MiB v5e/v6e, 64 MiB v7x
    except Exception:
        cap = 64 * 1024 * 1024
    vmem_limit = int(cap * 0.9)

    w_foot = 2 * f * c_pad * dt_bytes          # double-buffered resident W
    b_foot = 2 * c_pad * 4                     # double-buffered bias row (f32)
    slack = 2 * 1024 * 1024
    tile_budget = vmem_limit - w_foot - b_foot - slack
    # TODO(synk): if tile_budget goes non-positive (huge F*C, esp. v7x's 64 MiB VMEM), add a
    # K-reduction grid axis ("arbitrary") with a (tm, c_pad) f32 accumulator instead of a
    # fully resident W.
    tile_budget = max(tile_budget, 2 * 1024 * 1024)

    out_row_bytes = c_pad * 4 if emit_log_probs else 0        # f32 log-probs
    per_row = 2 * (f * dt_bytes + out_row_bytes + 4)          # 2x-buffered X / out / pred
    tm = tile_budget // max(per_row, 1)
    tm = max(_SUBLANE, min(4096, (tm // _SUBLANE) * _SUBLANE))
    if tm >= n:
        tm = n                                                 # single tile for small inputs
    return int(tm), vmem_limit


def _logits_block(x_ref, w_ref, b_ref):
    # MXU dot with f32 accumulation; f32 bias (+ -1e30 on padded classes) added on the VPU.
    logits = jnp.dot(x_ref[...], w_ref[...], preferred_element_type=jnp.float32)
    return logits + b_ref[...]


def _argmax_rows(logits, m):
    # First-max tie-break, identical to jnp.argmax; padded classes carry -1e30.
    idx = jax.lax.broadcasted_iota(jnp.int32, logits.shape, 1)
    big = jnp.iinfo(jnp.int32).max
    return jnp.min(jnp.where(logits == m, idx, big), axis=1, keepdims=True)


def _logsoftmax_argmax_kernel(x_ref, w_ref, b_ref, out_ref, pred_ref):
    logits = _logits_block(x_ref, w_ref, b_ref)
    m = jnp.max(logits, axis=1, keepdims=True)
    shifted = logits - m
    denom = jnp.sum(jnp.exp(shifted), axis=1, keepdims=True)
    out_ref[...] = (shifted - jnp.log(denom)).astype(out_ref.dtype)
    pred_ref[...] = _argmax_rows(logits, m)


def _argmax_only_kernel(x_ref, w_ref, b_ref, pred_ref):
    # Predict path: no log-prob writeback at all.
    # TODO(synk): emit predictions as a lane-dense (n/128, 128) slab once this path dominates.
    logits = _logits_block(x_ref, w_ref, b_ref)
    m = jnp.max(logits, axis=1, keepdims=True)
    pred_ref[...] = _argmax_rows(logits, m)


@functools.partial(jax.jit, static_argnames=("compute_dtype", "emit_log_probs"))
def _model_wrapper_core(x, w, b, compute_dtype=jnp.bfloat16, emit_log_probs=True):
    n, f = x.shape
    f2, c = w.shape
    assert f == f2 and b.shape == (c,)

    dt = jnp.dtype(compute_dtype)
    c_pad = _round_up(c, _LANE)                       # lane-dense classes (unmasked stores)
    tm, vmem_limit = _plan_tiles(n, f, c_pad, dt.itemsize, emit_log_probs)

    # No padded copy of X: only a dtype cast (no-op if the caller already passes bf16).
    x_c = x.astype(dt)
    # W is small relative to X; padding its class dim is cheap. Padded columns are zero.
    w_p = jnp.zeros((f, c_pad), dtype=dt).at[:, :c].set(w.astype(dt))
    # Bias stays f32; padded classes get -1e30 so they never win max / exp-sum / argmax.
    b_p = jnp.full((1, c_pad), _NEG_LARGE, dtype=jnp.float32).at[0, :c].set(
        b.astype(jnp.float32))

    grid = (pl.cdiv(n, tm),)

    in_specs = [
        pl.BlockSpec((tm, f), lambda i: (i, 0)),        # row tiles of X (pipelined)
        pl.BlockSpec((f, c_pad), lambda i: (0, 0)),     # W resident across the grid
        pl.BlockSpec((1, c_pad), lambda i: (0, 0)),     # bias row (f32)
    ]

    if emit_log_probs:
        kernel = _logsoftmax_argmax_kernel
        out_shape = (jax.ShapeDtypeStruct((n, c_pad), jnp.float32),
                     jax.ShapeDtypeStruct((n, 1), jnp.int32))
        out_specs = [pl.BlockSpec((tm, c_pad), lambda i: (i, 0)),
                     pl.BlockSpec((tm, 1), lambda i: (i, 0))]
        out_bytes = n * c_pad * 4 + n * 4
    else:
        kernel = _argmax_only_kernel
        out_shape = jax.ShapeDtypeStruct((n, 1), jnp.int32)
        out_specs = pl.BlockSpec((tm, 1), lambda i: (i, 0))
        out_bytes = n * 4

    cost = pl.CostEstimate(
        flops=2 * n * f * c_pad,
        transcendentals=(n * c_pad) if emit_log_probs else 0,
        bytes_accessed=n * f * dt.itemsize + f * c_pad * dt.itemsize + c_pad * 4 + out_bytes,
    )

    res = pl.pallas_call(
        kernel,
        out_shape=out_shape,
        grid_spec=pltpu.PrefetchScalarGridSpec(
            num_scalar_prefetch=0,
            grid=grid,
            in_specs=in_specs,
            out_specs=out_specs,
        ),
        compiler_params=pltpu.CompilerParams(
            dimension_semantics=("parallel",),        # megacore sharding of the row grid
            vmem_limit_bytes=vmem_limit,
        ),
        cost_estimate=cost,
    )(x_c, w_p, b_p)

    if emit_log_probs:
        out_padded, pred = res
        return out_padded[:, :c], pred[:, 0]
    return res[:, 0]


def model_wrapper_test_step(x, w, b, compute_dtype=jnp.bfloat16):
    """Equivalent of ModelWrapper.test_step: log_softmax(model(x), dim=1)."""
    out, _ = _model_wrapper_core(x, w, b, compute_dtype=compute_dtype, emit_log_probs=True)
    return out


def model_wrapper_predict(x, w, b, compute_dtype=jnp.bfloat16):
    """Equivalent of ModelWrapper.predict: argmax over classes (no log-prob writeback)."""
    return _model_wrapper_core(x, w, b, compute_dtype=compute_dtype, emit_log_probs=False)


if __name__ == "__main__":
    key = jax.random.PRNGKey(0)
    kx, kw, kb = jax.random.split(key, 3)

    N, F, C = 8, 32, 16  # nodes, features, classes (small synthetic shapes)
    x = jax.random.normal(kx, (N, F), dtype=jnp.float32)
    w = jax.random.normal(kw, (F, C), dtype=jnp.float32) * 0.1
    b = jax.random.normal(kb, (C,), dtype=jnp.float32) * 0.1

    # Default (bf16 operand) path.
    out = model_wrapper_test_step(x, w, b)
    pred = model_wrapper_predict(x, w, b)
    jax.block_until_ready((out, pred))

    # Reference matching the bf16-operand / f32-accumulation recipe.
    x16, w16 = x.astype(jnp.bfloat16), w.astype(jnp.bfloat16)
    ref16 = jax.nn.log_softmax(
        jnp.dot(x16, w16, preferred_element_type=jnp.float32) + b, axis=1)
    assert out.shape == (N, C)
    assert jnp.allclose(out, ref16, atol=1e-4, rtol=1e-4), "bf16 log_softmax mismatch"
    assert jnp.array_equal(pred, jnp.argmax(ref16, axis=1)), "bf16 argmax mismatch"

    # f32 path sanity check against the plain f32 reference.
    out32, pred32 = _model_wrapper_core(x, w, b, compute_dtype=jnp.float32,
                                        emit_log_probs=True)
    jax.block_until_ready((out32, pred32))
    ref32 = jax.nn.log_softmax(x @ w + b, axis=1)
    assert jnp.allclose(out32, ref32, atol=1e-5, rtol=1e-5), "f32 log_softmax mismatch"
    assert jnp.array_equal(pred32, jnp.argmax(ref32, axis=1)), "f32 argmax mismatch"

    print("KERNEL_OK")
</pallas_src>

<mosaic_0001>
module attributes {stable_mosaic.version = 11 : i64} {
  func.func @_logsoftmax_argmax_kernel(%arg0: i32, %arg1: memref<8x32xbf16, #tpu.memory_space<vmem>>, %arg2: memref<32x128xbf16, #tpu.memory_space<vmem>>, %arg3: memref<1x128xf32, #tpu.memory_space<vmem>>, %arg4: memref<8x128xf32, #tpu.memory_space<vmem>>, %arg5: memref<8x1xi32, #tpu.memory_space<vmem>>) attributes {dimension_semantics = [#tpu.dimension_semantics<parallel>], iteration_bounds = array<i64: 1>, scalar_prefetch = 0 : i64, scratch_operands = 0 : i64, tpu.core_type = #tpu.core_type<tc>, window_params = [{transform_indices = @transform_0, window_bounds = array<i64: 8, 32>}, {pipeline_mode = #tpu.pipeline_mode<synchronous>, transform_indices = @transform_1, window_bounds = array<i64: 32, 128>}, {pipeline_mode = #tpu.pipeline_mode<synchronous>, transform_indices = @transform_2, window_bounds = array<i64: 1, 128>}, {transform_indices = @transform_3, window_bounds = array<i64: 8, 128>}, {transform_indices = @transform_4, window_bounds = array<i64: 8, 1>}]} {
    %c0 = arith.constant 0 : index
    %c0_0 = arith.constant 0 : index
    %0 = vector.load %arg1[%c0, %c0_0] : memref<8x32xbf16, #tpu.memory_space<vmem>>, vector<8x32xbf16>
    %c0_1 = arith.constant 0 : index
    %c0_2 = arith.constant 0 : index
    %1 = vector.load %arg2[%c0_1, %c0_2] : memref<32x128xbf16, #tpu.memory_space<vmem>>, vector<32x128xbf16>
    %cst = arith.constant dense<0.000000e+00> : vector<8x128xf32>
    %2 = tpu.matmul %0, %1, %cst {dimension_numbers = #tpu.dot_dimension_numbers<[1], [0], [0], [1], [0, 0, 1, 1], [], []>} : vector<8x32xbf16>, vector<32x128xbf16>, vector<8x128xf32> -> vector<8x128xf32>
    %c0_3 = arith.constant 0 : index
    %c0_4 = arith.constant 0 : index
    %3 = vector.load %arg3[%c0_3, %c0_4] : memref<1x128xf32, #tpu.memory_space<vmem>>, vector<1x128xf32>
    %4 = vector.broadcast %3 : vector<1x128xf32> to vector<8x128xf32>
    %5 = arith.addf %2, %4 : vector<8x128xf32>
    %cst_5 = arith.constant dense<0xFF800000> : vector<8xf32>
    %6 = vector.multi_reduction <maximumf>, %5, %cst_5 [1] : vector<8x128xf32> to vector<8xf32>
    %7 = vector.shape_cast %6 : vector<8xf32> to vector<8x1xf32>
    %8 = vector.broadcast %7 : vector<8x1xf32> to vector<8x128xf32>
    %9 = arith.subf %5, %8 : vector<8x128xf32>
    %10 = math.exp %9 : vector<8x128xf32>
    %cst_6 = arith.constant dense<0.000000e+00> : vector<8xf32>
    %11 = vector.multi_reduction <add>, %10, %cst_6 [1] : vector<8x128xf32> to vector<8xf32>
    %12 = vector.shape_cast %11 : vector<8xf32> to vector<8x1xf32>
    %13 = math.log %12 : vector<8x1xf32>
    %14 = vector.broadcast %13 : vector<8x1xf32> to vector<8x128xf32>
    %15 = arith.subf %9, %14 : vector<8x128xf32>
    %c0_7 = arith.constant 0 : index
    %c0_8 = arith.constant 0 : index
    %16 = vector.load %arg4[%c0_7, %c0_8] : memref<8x128xf32, #tpu.memory_space<vmem>>, vector<8x128xf32>
    tpu.vector_store %arg4[%c0_7, %c0_8], %15 {strides = array<i32>} : memref<8x128xf32, #tpu.memory_space<vmem>>, vector<8x128xf32>,
    %17 = tpu.iota {dimensions = array<i32: 1>} : vector<8x128xi32>
    %18 = vector.broadcast %7 : vector<8x1xf32> to vector<8x128xf32>
    %19 = arith.cmpf oeq, %5, %18 : vector<8x128xf32>
    %c2147483647_i32 = arith.constant 2147483647 : i32
    %20 = vector.broadcast %c2147483647_i32 : i32 to vector<8x128xi32>
    %21 = arith.select %19, %17, %20 : vector<8x128xi1>, vector<8x128xi32>
    %cst_9 = arith.constant dense<2147483647> : vector<8xi32>
    %22 = vector.multi_reduction <minsi>, %21, %cst_9 [1] : vector<8x128xi32> to vector<8xi32>
    %23 = vector.shape_cast %22 : vector<8xi32> to vector<8x1xi32>
    %c0_10 = arith.constant 0 : index
    %c0_11 = arith.constant 0 : index
    %24 = vector.load %arg5[%c0_10, %c0_11] : memref<8x1xi32, #tpu.memory_space<vmem>>, vector<8x1xi32>
    tpu.vector_store %arg5[%c0_10, %c0_11], %23 {strides = array<i32>} : memref<8x1xi32, #tpu.memory_space<vmem>>, vector<8x1xi32>,
    return
  }
  func.func @transform_0(%arg0: i32) -> (i32, i32) {
    %c0_i32 = arith.constant 0 : i32
    %c0_i32_0 = arith.constant 0 : i32
    return %arg0, %c0_i32 : i32, i32
  }
  func.func @transform_1(%arg0: i32) -> (i32, i32) {
    %c0_i32 = arith.constant 0 : i32
    %c0_i32_0 = arith.constant 0 : i32
    %c0_i32_1 = arith.constant 0 : i32
    return %c0_i32, %c0_i32_0 : i32, i32
  }
  func.func @transform_2(%arg0: i32) -> (i32, i32) {
    %c0_i32 = arith.constant 0 : i32
    %c0_i32_0 = arith.constant 0 : i32
    %c0_i32_1 = arith.constant 0 : i32
    return %c0_i32, %c0_i32_0 : i32, i32
  }
  func.func @transform_3(%arg0: i32) -> (i32, i32) {
    %c0_i32 = arith.constant 0 : i32
    %c0_i32_0 = arith.constant 0 : i32
    return %arg0, %c0_i32 : i32, i32
  }
  func.func @transform_4(%arg0: i32) -> (i32, i32) {
    %c0_i32 = arith.constant 0 : i32
    %c0_i32_0 = arith.constant 0 : i32
    return %arg0, %c0_i32 : i32, i32
  }
}

</mosaic_0001>

<llo_original>
// kernel: _model_wrapper_core.1
$region0: #{_model_wrapper_core.1}
  #allocation0 [shape = 'u32[]', space=smem, size = 0x4, offset = 0x4, fixed_abs, tag = 'smem constant byte address 0x4 - core index']
  #allocation1 [shape = 'u32[144,128]{1,0:T(1,128)}', space=vmem, size = 0x12000, scoped, tag = 'internal scratch']
  %s0 = inlined_call_operand.vmem [shape: bf16[8,32], index: 0, kind: input, shape index: {}]
  %s1 = inlined_call_operand.vmem [shape: bf16[32,128], index: 1, kind: input, shape index: {}]
  %s2 = inlined_call_operand.vmem [shape: f32[1,128], index: 2, kind: input, shape index: {}]
  %s3 = inlined_call_operand.hbm [shape: f32[8,128], index: 3, kind: output, shape index: {0}]
  %s4 = inlined_call_operand.vmem [shape: s32[8,1], index: 4, kind: output, shape index: {1}]
  %5 = xla_tuple %s3, %s4
  %s6 = sld [smem:[#allocation0]]
  $region30: #{_model_wrapper_core.1} parent=0
    _
  %s8 = ssub.s32 1, %s6
  %s9 = scalar_select 0, %s8, %s6
  $region1: #{_model_wrapper_core.1} parent=0
    #allocation2 [shape = 'u8[4096]{0}', space=vmem, size = 0x1000, scoped, tag = 'output window, operand 0, single buffered']
    #allocation3 [shape = 's32[1]{0}', space=sflag, size = 0x4, scoped, tag = 'scoped memory for _model_wrapper_core.1']
    %10 = vsyncpa [#allocation3], 0
    // Predicated region
    $region2: #{_model_wrapper_core.1} parent=1 // pred_check
      _
    $region3: #{_model_wrapper_core.1} parent=1 // pred_check_branch
      %12 = sbr.rel (0) target = $region5
    $region4: #{_model_wrapper_core.1} parent=1 // pred_region
      _
    $region5: #{_model_wrapper_core.1} parent=1 // pred_fallthru
      _
    // Predicated region
    $region6: #{_model_wrapper_core.1} parent=1 // pred_check
      _
    $region7: #{_model_wrapper_core.1} parent=1 // pred_check_branch
      %14 = sbr.rel (0) target = $region9
    $region8: #{_model_wrapper_core.1} parent=1 // pred_region
      _
    $region9: #{_model_wrapper_core.1} parent=1 // pred_fallthru
      _
    // Predicated region
    $region10: #{_model_wrapper_core.1} parent=1 // pred_check
      _
    $region11: #{_model_wrapper_core.1} parent=1 // pred_check_branch
      %16 = sbr.rel (0) target = $region13
    $region12: #{_model_wrapper_core.1} parent=1 // pred_region
      _
    $region13: #{_model_wrapper_core.1} parent=1 // pred_fallthru
      _
    %v18 = vld [vmem:[%s0] sm:$0xf]
    %v19 = vld [vmem:[%s1] sm:$0xf]
    %v20 = vld [vmem:[%s1 + $0x4] sm:$0xf]
    %v21 = vld [vmem:[%s1 + $0x8] sm:$0xf]
    %v22 = vld [vmem:[%s1 + $0xc] sm:$0xf]
    %v23 = vld [vmem:[%s2] sm:$0x1]
    %v25 = vlaneseq
    %v26 = vshrl.u32 %v25, 7
    %v27 = vsub.s32 0, %v26
    %v28 = vrot.slane %v23, %v27
    %v34 = vunpack.c.l.b16 %v19
    %v35 = vunpack.c.l.b16 %v20
    %v36 = vunpack.c.l.b16 %v21
    %v37 = vunpack.c.l.b16 %v22
    %v38 = vpack.c.b16 %v35, %v34
    %v39 = vpack.c.b16 %v37, %v36
    %vm42 = vcmask 261120
    %v44 = vsel %vm42, %v18, 0
    %46 = vmatprep.subr.bf16.mxu0 0
    %47 = vmatpush1.bf16.msra.mxu0 %v38
    %48 = vmatprep.subr.bf16.mxu0 0
    %49 = vmatpush1.bf16.msra.mxu0 %v39
    %50 = vmatprep.subr.bf16.mxu0 0
    %51 = vmatpush1.bf16.msra.mxu0 0
    %52 = vmatprep.subr.bf16.mxu0 0
    %53 = vmatpush1.bf16.msra.mxu0 0
    %54 = vmatprep.subr.bf16.mxu0 0
    %55 = vmatpush1.bf16.msra.mxu0 0
    %56 = vmatprep.subr.bf16.mxu0 0
    %57 = vmatpush1.bf16.msra.mxu0 0
    %58 = vmatprep.subr.bf16.mxu0 0
    %59 = vmatpush1.bf16.msra.mxu0 0
    %60 = vmatprep.subr.bf16.mxu0 0
    %61 = vmatpush1.bf16.msra.mxu0 0
    %62 = vmatprep.subr.bf16.mxu0 0
    %63 = vmatpush1.bf16.msra.mxu0 0
    %64 = vmatprep.subr.bf16.mxu0 0
    %65 = vmatpush1.bf16.msra.mxu0 0
    %66 = vmatprep.subr.bf16.mxu0 0
    %67 = vmatpush1.bf16.msra.mxu0 0
    %68 = vmatprep.subr.bf16.mxu0 0
    %69 = vmatpush1.bf16.msra.mxu0 0
    %70 = vmatprep.subr.bf16.mxu0 0
    %71 = vmatpush1.bf16.msra.mxu0 0
    %72 = vmatprep.subr.bf16.mxu0 0
    %73 = vmatpush1.bf16.msra.mxu0 0
    %74 = vmatprep.subr.bf16.mxu0 0
    %75 = vmatpush1.bf16.msra.mxu0 0
    %76 = vmatprep.subr.bf16.mxu0 0
    %77 = vmatpush1.bf16.msra.mxu0 0
    %78 = vmatprep.mubr.bf16.mxu0 0
    %79 = vmatmul.mubr.bf16.gmra.mrb[0].mxu0 %v44
    %v80 = vpop.f32.mrb[0].mxu0
    %v81 = vadd.f32 %v28, %v80
    %v82 = vpop.f32.mrb[0].mxu0
    %v83 = vpop.f32.mrb[0].mxu0
    %v84 = vpop.f32.mrb[0].mxu0
    %85 = vdwg.mxu0
    %86 = vmax.xlane.f32.xlu0 %v81
    %v87 = vpop.xlane.xlu0 %86
    %v88 = vsub.f32 %v81, %v87
    %v89 = vmul.f32 %v88, 1.442695
    %v90 = vpow.pop %v89
    %91 = vadd.xlane.f32.xlu0 %v90
    %v92 = vpop.xlane.xlu0 %91
    %v93 = vlog2.pop %v92
    %v94 = vmul.f32 %v93, 0.6931472
    %v95 = vsub.f32 %v88, %v94
    %96 = vst [vmem:[#allocation2] sm:$0xff] %v95
    %v97 = vlaneseq
    %v98 = vand.u32 %v97, 127
    %vm99 = vcmp.eq.f32.partialorder %v81, %v87
    %v100 = vsel %vm99, %v98, 2147483647
    %v101 = vand.u32 %v100, 65535
    %v102 = vshra.s32 %v100, 16
    %v103 = vcvt.s32.f32 %v101
    %v104 = vcvt.s32.f32 %v102
    %105 = vmin.xlane.f32.xlu0 %v104
    %v106 = vpop.xlane.xlu0 %105
    %vm107 = vcmp.eq.f32.partialorder %v104, %v106
    %v108 = vsel %vm107, %v103, inf
    %109 = vmin.xlane.f32.xlu0 %v108
    %v110 = vpop.xlane.xlu0 %109
    %v111 = vcvt.f32.s32 %v110
    %v112 = vcvt.f32.s32 %v106
    %v113 = vshll.u32 %v112, 16
    %v114 = vadd.s32 %v113, %v111
    %vm115 = vcmask 7168
    %116 = vst.msk [vmem:[%s4] sm:$0xff] %vm115, %v114
    // Predicated region
    $region14: #{_model_wrapper_core.1} parent=1 // pred_check
      _
    $region15: #{_model_wrapper_core.1} parent=1 // pred_check_branch
      %118 = sbr.rel (0) target = $region17
    $region16: #{_model_wrapper_core.1} parent=1 // pred_region
      %s120 = ssub.s32 128, 128
      %121 = vsyncadd [#allocation3], %s120
      %s123 = sshll.u32 [#allocation2], 4
      %s124 = int_to_ptr.vmem [resolvable:$true] %s123
      %126 = dma.vmem_to_hbm [thread:$0]  %s124, 128, %s3, [#allocation3]
    $region17: #{_model_wrapper_core.1} parent=1 // pred_fallthru
      _
    // Predicated region
    $region18: #{_model_wrapper_core.1} parent=1 // pred_check
      _
    $region19: #{_model_wrapper_core.1} parent=1 // pred_check_branch
      %128 = sbr.rel (0) target = $region21
    $region20: #{_model_wrapper_core.1} parent=1 // pred_region
      _
    $region21: #{_model_wrapper_core.1} parent=1 // pred_fallthru
      _
    // Predicated region
    $region22: #{_model_wrapper_core.1} parent=1 // pred_check
      _
    $region23: #{_model_wrapper_core.1} parent=1 // pred_check_branch
      %130 = sbr.rel (0) target = $region25
    $region24: #{_model_wrapper_core.1} parent=1 // pred_region
      %131 = dma.done [#allocation3], 128
    $region25: #{_model_wrapper_core.1} parent=1 // pred_fallthru
      _
    // Predicated region
    $region26: #{_model_wrapper_core.1} parent=1 // pred_check
      _
    $region27: #{_model_wrapper_core.1} parent=1 // pred_check_branch
      %133 = sbr.rel (0) target = $region29
    $region28: #{_model_wrapper_core.1} parent=1 // pred_region
      _
    $region29: #{_model_wrapper_core.1} parent=1 // pred_fallthru
      _
    %134 = vsyncpa [#allocation3], 1

</llo_original>
